<compile_context>
chip_gen: v7x
topology: tpu7x:2x2x1
jax: 0.10.0
libtpu: 0.0.40
codegen_flags: <defaults>
</compile_context>

<pallas_src>
import functools

import jax
import jax.numpy as jnp
from jax.experimental import pallas as pl
from jax.experimental.pallas import tpu as pltpu


def _cdiv(a, b):
    return (a + b - 1) // b


def _round_up(x, m):
    return ((x + m - 1) // m) * m


def _one_to_one_kernel(x_ref, w_ref, b_ref, o_ref, *, num_hidden, sigmoid):
    """Fused per-column MLP on one (TILE_N, TILE_D) tile.

    x_ref: (TILE_N, TILE_D) input tile in VMEM
    w_ref: (L+1, TILE_D) per-column scalar weights (rows 0..L-1 hidden, row L final)
    b_ref: (L+1, TILE_D) per-column scalar biases
    o_ref: (TILE_N, TILE_D) output tile
    """
    # Hoist: one vector load for the whole weight/bias slab, reused by every layer.
    # (Block index depends only on the OUTER D grid axis -> resident across N.)
    w = w_ref[...].astype(jnp.float32)
    b = b_ref[...].astype(jnp.float32)
    # bf16 (or f32) HBM I/O; compute always in f32 (portable: v5e has no bf16 VPU/EUP).
    y = x_ref[...].astype(jnp.float32)
    for l in range(num_hidden):
        y = y * w[l] + b[l]                       # (TILE_N, TILE_D) * (TILE_D,) broadcast (VPU)
        if sigmoid and l == num_hidden - 1:
            y = jax.nn.sigmoid(y)                 # EUP
        else:
            y = jnp.tanh(y)                       # EUP
    # Final Linear(1, 1), no activation.
    o_ref[...] = (y * w[num_hidden] + b[num_hidden]).astype(o_ref.dtype)


def one_to_one_deep_net(x, weights, biases, *, sigmoid=False,
                        tile_n=1024, tile_d=1024):
    """x: (N, D); weights/biases: (L+1, D). Returns (N, D) with x's dtype.

    Row l of weights/biases holds the scalar weight/bias of layer l of every
    column's private 1->1 Linear; row L is the final Linear. L+1 == 1 reproduces
    the module's `linear=True` path (single Linear, no activation).
    """
    N, D = x.shape
    Lp1, Dw = weights.shape
    assert Dw == D and biases.shape == (Lp1, D)
    num_hidden = Lp1 - 1

    # Adaptive, (8,128)-aligned tile sizes: pick the number of blocks first, then
    # the smallest aligned tile covering each block -> padded extent barely
    # exceeds the real extent (no wasteful round-up to the max tile).
    n_blocks_d = _cdiv(D, tile_d)
    n_blocks_n = _cdiv(N, tile_n)
    tile_d_eff = _round_up(_cdiv(D, n_blocks_d), 128)
    tile_n_eff = _round_up(_cdiv(N, n_blocks_n), 8)
    gd = _cdiv(D, tile_d_eff)
    gn = _cdiv(N, tile_n_eff)

    # v7x has 2 TensorCores: make sure there are >=2 parallel programs when the
    # whole problem would otherwise fit in a single tile (harmless on v5e/v6e).
    if gd == 1 and gn == 1 and N > 8:
        tile_n_eff = _round_up(_cdiv(N, 2), 8)
        gn = _cdiv(N, tile_n_eff)

    # Grid: D (feature) axis OUTER, N axis INNER -> weight/bias block index (0, j)
    # is constant across the inner N sweep, so the slab stays resident in VMEM.
    grid = (gd, gn)

    kernel = functools.partial(
        _one_to_one_kernel, num_hidden=num_hidden, sigmoid=sigmoid
    )

    bytes_per_elem = jnp.dtype(x.dtype).itemsize
    cost = pl.CostEstimate(
        flops=2 * (num_hidden + 1) * N * D,
        transcendentals=num_hidden * N * D,
        bytes_accessed=(2 * N * D) * bytes_per_elem
        + 2 * Lp1 * D * jnp.dtype(weights.dtype).itemsize,
    )

    # No padding, no output slice: ragged last blocks are handled by Pallas
    # (clamped DMA reads; out-of-bounds stores masked). Garbage lanes only feed
    # elementwise tanh/sigmoid and their results are discarded.
    return pl.pallas_call(
        kernel,
        out_shape=jax.ShapeDtypeStruct((N, D), x.dtype),
        grid=grid,
        in_specs=[
            pl.BlockSpec((tile_n_eff, tile_d_eff), lambda j, i: (i, j)),  # x
            pl.BlockSpec((Lp1, tile_d_eff), lambda j, i: (0, j)),         # weights
            pl.BlockSpec((Lp1, tile_d_eff), lambda j, i: (0, j)),         # biases
        ],
        out_specs=pl.BlockSpec((tile_n_eff, tile_d_eff), lambda j, i: (i, j)),
        compiler_params=pltpu.CompilerParams(
            dimension_semantics=("parallel", "parallel"),
            vmem_limit_bytes=32 * 1024 * 1024,
        ),
        cost_estimate=cost,
    )(x, weights, biases)


def _reference(x, weights, biases, *, sigmoid=False):
    """Pure-JAX reference mirroring the PyTorch forward loop."""
    num_hidden = weights.shape[0] - 1
    y = x.astype(jnp.float32)
    for l in range(num_hidden):
        y = y * weights[l][None, :] + biases[l][None, :]
        if sigmoid and l == num_hidden - 1:
            y = jax.nn.sigmoid(y)
        else:
            y = jnp.tanh(y)
    return (y * weights[num_hidden][None, :] + biases[num_hidden][None, :]).astype(x.dtype)


if __name__ == "__main__":
    key = jax.random.PRNGKey(0)

    def make_inputs(key, N, D, L):
        kx, kw, kb = jax.random.split(key, 3)
        x = jax.random.normal(kx, (N, D), dtype=jnp.float32)
        # PyTorch nn.Linear(1,1) init: U(-1, 1) for both weight and bias (fan_in=1).
        w = jax.random.uniform(kw, (L + 1, D), dtype=jnp.float32,
                               minval=-1.0, maxval=1.0)
        b = jax.random.uniform(kb, (L + 1, D), dtype=jnp.float32,
                               minval=-1.0, maxval=1.0)
        return x, w, b

    ok = True

    # 1) Small config matching the module spec: d_in == d_out == 4,
    #    hs = [32, 32, 32] -> L = 2 hidden (Linear(1,1) + Tanh) blocks + final Linear.
    k1, k2, k3, k4, key = jax.random.split(key, 5)
    N, D = 8, 4
    hs = [32, 32, 32]
    L = len(hs) - 1
    x, w, b = make_inputs(k1, N, D, L)
    out = jax.block_until_ready(one_to_one_deep_net(x, w, b, sigmoid=False))
    ref = _reference(x, w, b, sigmoid=False)
    ok &= out.shape == x.shape and out.dtype == x.dtype
    ok &= bool(jnp.allclose(out, ref, atol=1e-5, rtol=1e-5))

    # 2) Same small config with sigmoid replacing the last hidden Tanh.
    x, w, b = make_inputs(k2, N, D, L)
    out = jax.block_until_ready(one_to_one_deep_net(x, w, b, sigmoid=True))
    ref = _reference(x, w, b, sigmoid=True)
    ok &= bool(jnp.allclose(out, ref, atol=1e-5, rtol=1e-5))

    # 3) Larger, unaligned (ragged in BOTH axes) shape: multi-block grid, no
    #    wrapper-side padding, masked stores on the last N and D blocks.
    x, w, b = make_inputs(k3, 3001, 260, 3)
    out = jax.block_until_ready(one_to_one_deep_net(x, w, b, sigmoid=False))
    ref = _reference(x, w, b, sigmoid=False)
    ok &= out.shape == x.shape
    ok &= bool(jnp.allclose(out, ref, atol=1e-5, rtol=1e-5))

    # 4) `linear=True` equivalent: single final Linear, no activations (L = 0).
    x, w, b = make_inputs(k4, 64, 4, 0)
    out = jax.block_until_ready(one_to_one_deep_net(x, w, b, sigmoid=False))
    ref = _reference(x, w, b, sigmoid=False)
    ok &= bool(jnp.allclose(out, ref, atol=1e-5, rtol=1e-5))

    assert ok
    print("KERNEL_OK")
</pallas_src>

<mosaic_0001>
module attributes {stable_mosaic.version = 11 : i64} {
  func.func @_one_to_one_kernel(%arg0: i32, %arg1: i32, %arg2: memref<8x128xf32, #tpu.memory_space<vmem>>, %arg3: memref<3x128xf32, #tpu.memory_space<vmem>>, %arg4: memref<3x128xf32, #tpu.memory_space<vmem>>, %arg5: memref<8x128xf32, #tpu.memory_space<vmem>>) attributes {dimension_semantics = [#tpu.dimension_semantics<parallel>, #tpu.dimension_semantics<parallel>], iteration_bounds = array<i64: 1, 1>, scalar_prefetch = 0 : i64, scratch_operands = 0 : i64, tpu.core_type = #tpu.core_type<tc>, window_params = [{transform_indices = @transform_0, window_bounds = array<i64: 8, 128>}, {transform_indices = @transform_1, window_bounds = array<i64: 3, 128>}, {transform_indices = @transform_2, window_bounds = array<i64: 3, 128>}, {transform_indices = @transform_3, window_bounds = array<i64: 8, 128>}]} {
    %c0 = arith.constant 0 : index
    %c0_0 = arith.constant 0 : index
    %0 = vector.load %arg3[%c0, %c0_0] : memref<3x128xf32, #tpu.memory_space<vmem>>, vector<3x128xf32>
    %c0_1 = arith.constant 0 : index
    %c0_2 = arith.constant 0 : index
    %1 = vector.load %arg4[%c0_1, %c0_2] : memref<3x128xf32, #tpu.memory_space<vmem>>, vector<3x128xf32>
    %c0_3 = arith.constant 0 : index
    %c0_4 = arith.constant 0 : index
    %2 = vector.load %arg2[%c0_3, %c0_4] : memref<8x128xf32, #tpu.memory_space<vmem>>, vector<8x128xf32>
    %3 = vector.extract_strided_slice %0 {offsets = [0, 0], sizes = [1, 128], strides = [1, 1]} : vector<3x128xf32> to vector<1x128xf32>
    %4 = vector.shape_cast %3 : vector<1x128xf32> to vector<128xf32>
    %5 = vector.shape_cast %4 : vector<128xf32> to vector<1x128xf32>
    %6 = vector.broadcast %5 : vector<1x128xf32> to vector<8x128xf32>
    %7 = arith.mulf %2, %6 : vector<8x128xf32>
    %8 = vector.extract_strided_slice %1 {offsets = [0, 0], sizes = [1, 128], strides = [1, 1]} : vector<3x128xf32> to vector<1x128xf32>
    %9 = vector.shape_cast %8 : vector<1x128xf32> to vector<128xf32>
    %10 = vector.shape_cast %9 : vector<128xf32> to vector<1x128xf32>
    %11 = vector.broadcast %10 : vector<1x128xf32> to vector<8x128xf32>
    %12 = arith.addf %7, %11 : vector<8x128xf32>
    %13 = math.tanh %12 : vector<8x128xf32>
    %14 = vector.extract_strided_slice %0 {offsets = [1, 0], sizes = [1, 128], strides = [1, 1]} : vector<3x128xf32> to vector<1x128xf32>
    %15 = vector.shape_cast %14 : vector<1x128xf32> to vector<128xf32>
    %16 = vector.shape_cast %15 : vector<128xf32> to vector<1x128xf32>
    %17 = vector.broadcast %16 : vector<1x128xf32> to vector<8x128xf32>
    %18 = arith.mulf %13, %17 : vector<8x128xf32>
    %19 = vector.extract_strided_slice %1 {offsets = [1, 0], sizes = [1, 128], strides = [1, 1]} : vector<3x128xf32> to vector<1x128xf32>
    %20 = vector.shape_cast %19 : vector<1x128xf32> to vector<128xf32>
    %21 = vector.shape_cast %20 : vector<128xf32> to vector<1x128xf32>
    %22 = vector.broadcast %21 : vector<1x128xf32> to vector<8x128xf32>
    %23 = arith.addf %18, %22 : vector<8x128xf32>
    %24 = math.tanh %23 : vector<8x128xf32>
    %25 = vector.extract_strided_slice %0 {offsets = [2, 0], sizes = [1, 128], strides = [1, 1]} : vector<3x128xf32> to vector<1x128xf32>
    %26 = vector.shape_cast %25 : vector<1x128xf32> to vector<128xf32>
    %27 = vector.shape_cast %26 : vector<128xf32> to vector<1x128xf32>
    %28 = vector.broadcast %27 : vector<1x128xf32> to vector<8x128xf32>
    %29 = arith.mulf %24, %28 : vector<8x128xf32>
    %30 = vector.extract_strided_slice %1 {offsets = [2, 0], sizes = [1, 128], strides = [1, 1]} : vector<3x128xf32> to vector<1x128xf32>
    %31 = vector.shape_cast %30 : vector<1x128xf32> to vector<128xf32>
    %32 = vector.shape_cast %31 : vector<128xf32> to vector<1x128xf32>
    %33 = vector.broadcast %32 : vector<1x128xf32> to vector<8x128xf32>
    %34 = arith.addf %29, %33 : vector<8x128xf32>
    %c0_5 = arith.constant 0 : index
    %c0_6 = arith.constant 0 : index
    %35 = vector.load %arg5[%c0_5, %c0_6] : memref<8x128xf32, #tpu.memory_space<vmem>>, vector<8x128xf32>
    tpu.vector_store %arg5[%c0_5, %c0_6], %34 {strides = array<i32>} : memref<8x128xf32, #tpu.memory_space<vmem>>, vector<8x128xf32>,
    return
  }
  func.func @transform_0(%arg0: i32, %arg1: i32) -> (i32, i32) {
    %c0_i32 = arith.constant 0 : i32
    return %arg1, %arg0 : i32, i32
  }
  func.func @transform_1(%arg0: i32, %arg1: i32) -> (i32, i32) {
    %c0_i32 = arith.constant 0 : i32
    %c0_i32_0 = arith.constant 0 : i32
    return %c0_i32, %arg0 : i32, i32
  }
  func.func @transform_2(%arg0: i32, %arg1: i32) -> (i32, i32) {
    %c0_i32 = arith.constant 0 : i32
    %c0_i32_0 = arith.constant 0 : i32
    return %c0_i32, %arg0 : i32, i32
  }
  func.func @transform_3(%arg0: i32, %arg1: i32) -> (i32, i32) {
    %c0_i32 = arith.constant 0 : i32
    return %arg1, %arg0 : i32, i32
  }
}

</mosaic_0001>

<llo_original>
// kernel: tpu_custom_call.1
$region0: #{tpu_custom_call.1}
  #allocation0 [shape = 'u32[]', space=smem, size = 0x4, offset = 0x4, fixed_abs, tag = 'smem constant byte address 0x4 - core index']
  #allocation1 [shape = 'u32[144,128]{1,0:T(1,128)}', space=vmem, size = 0x12000, scoped, tag = 'internal scratch']
  %s0 = inlined_call_operand.vmem [shape: f32[8,4], index: 0, kind: input, shape index: {}]
  %s1 = inlined_call_operand.vmem [shape: f32[3,4], index: 1, kind: input, shape index: {}]
  %s2 = inlined_call_operand.vmem [shape: f32[3,4], index: 2, kind: input, shape index: {}]
  %s3 = inlined_call_operand.vmem [shape: f32[8,4], index: 3, kind: output, shape index: {}]
  %s4 = sld [smem:[#allocation0]]
  $region22: #{tpu_custom_call.1} parent=0
    _
  %s6 = ssub.s32 1, %s4
  %s7 = scalar_select 0, %s6, %s4
  // Predicated region
  $region2: #{tpu_custom_call.1} parent=0 // pred_check
    _
  $region3: #{tpu_custom_call.1} parent=0 // pred_check_branch
    %9 = sbr.rel (0) target = $region5
  $region4: #{tpu_custom_call.1} parent=0 // pred_region
    _
  $region5: #{tpu_custom_call.1} parent=0 // pred_fallthru
    _
  // Predicated region
  $region6: #{tpu_custom_call.1} parent=0 // pred_check
    _
  $region7: #{tpu_custom_call.1} parent=0 // pred_check_branch
    %11 = sbr.rel (0) target = $region9
  $region8: #{tpu_custom_call.1} parent=0 // pred_region
    _
  $region9: #{tpu_custom_call.1} parent=0 // pred_fallthru
    _
  // Predicated region
  $region10: #{tpu_custom_call.1} parent=0 // pred_check
    _
  $region11: #{tpu_custom_call.1} parent=0 // pred_check_branch
    %13 = sbr.rel (0) target = $region13
  $region12: #{tpu_custom_call.1} parent=0 // pred_region
    _
  $region13: #{tpu_custom_call.1} parent=0 // pred_fallthru
    _
  %v14 = vld [vmem:[%s1] sm:$0x7]
  %v15 = vld [vmem:[%s2] sm:$0x7]
  %v16 = vld [vmem:[%s0] sm:$0xff]
  %v17 = vlaneseq
  %v18 = vshrl.u32 %v17, 7
  %v19 = vsub.s32 0, %v18
  %v20 = vrot.slane %v14, %v19
  %v21 = vmul.f32 %v16, %v20
  %v22 = vlaneseq
  %v23 = vshrl.u32 %v22, 7
  %v24 = vsub.s32 0, %v23
  %v25 = vrot.slane %v15, %v24
  %v26 = vadd.f32 %v21, %v25
  %v27 = vtanh.pop %v26
  %v28 = vlaneseq
  %v29 = vshrl.u32 %v28, 7
  %v30 = vsub.s32 1, %v29
  %v31 = vrot.slane %v14, %v30
  %v32 = vmul.f32 %v27, %v31
  %v33 = vlaneseq
  %v34 = vshrl.u32 %v33, 7
  %v35 = vsub.s32 1, %v34
  %v36 = vrot.slane %v15, %v35
  %v37 = vadd.f32 %v32, %v36
  %v38 = vtanh.pop %v37
  %v39 = vlaneseq
  %v40 = vshrl.u32 %v39, 7
  %v41 = vsub.s32 2, %v40
  %v42 = vrot.slane %v14, %v41
  %v43 = vmul.f32 %v38, %v42
  %v44 = vlaneseq
  %v45 = vshrl.u32 %v44, 7
  %v46 = vsub.s32 2, %v45
  %v47 = vrot.slane %v15, %v46
  %v48 = vadd.f32 %v43, %v47
  %49 = vst [vmem:[%s3] sm:$0xff] %v48
  // Predicated region
  $region14: #{tpu_custom_call.1} parent=0 // pred_check
    _
  $region15: #{tpu_custom_call.1} parent=0 // pred_check_branch
    %51 = sbr.rel (0) target = $region17
  $region16: #{tpu_custom_call.1} parent=0 // pred_region
    _
  $region17: #{tpu_custom_call.1} parent=0 // pred_fallthru
    _
  // Predicated region
  $region18: #{tpu_custom_call.1} parent=0 // pred_check
    _
  $region19: #{tpu_custom_call.1} parent=0 // pred_check_branch
    %53 = sbr.rel (0) target = $region21
  $region20: #{tpu_custom_call.1} parent=0 // pred_region
    _
  $region21: #{tpu_custom_call.1} parent=0 // pred_fallthru
    _

</llo_original>
